<compile_context>
chip_gen: v5e
topology: v5e:2x2
jax: 0.10.0
libtpu: 0.0.40
codegen_flags: <defaults>
</compile_context>

<pallas_src>
import functools

import jax
import jax.numpy as jnp
from jax.experimental import pallas as pl
from jax.experimental.pallas import tpu as pltpu


def _point_gen_kernel(params_ref, o_ref, *, use_offset: bool):
    """One FPN level per grid step.

    params_ref : SMEM (L, 3) f32 -> [stride, reg_range_lo, reg_range_hi] per level
    o_ref      : VMEM (1, 4, T_pad) f32 tile for level l = program_id(0)
    """
    l = pl.program_id(0)
    stride = params_ref[l, 0]
    reg_lo = params_ref[l, 1]
    reg_hi = params_ref[l, 2]

    shape = o_ref.shape  # (1, 4, T_pad)
    # Row index selects which of the 4 output columns (PyTorch layout) a
    # sublane holds; lane index is the temporal position t.
    row = jax.lax.broadcasted_iota(jnp.int32, shape, dimension=1)
    t = jax.lax.broadcasted_iota(jnp.int32, shape, dimension=2).astype(jnp.float32)

    pts = t * stride
    if use_offset:  # static Python flag, resolved at trace time
        pts = pts + 0.5 * stride

    vals = jnp.where(
        row == 0, pts,
        jnp.where(row == 1, reg_lo,
                  jnp.where(row == 2, reg_hi, stride)))
    o_ref[...] = vals


def point_generator_forward(feats, fpn_strides, regression_range, max_seq_len,
                            use_offset=False):
    """Pallas-backed equivalent of PointGenerator.forward."""
    fpn_levels = len(fpn_strides)
    assert len(feats) == fpn_levels
    assert len(regression_range) == fpn_levels

    feat_lens = [int(f.shape[-1]) for f in feats]
    for feat_len, stride in zip(feat_lens, fpn_strides):
        n_buffer_pts = -(-max_seq_len // stride)  # len(arange(0, max_seq_len, stride))
        assert feat_len <= n_buffer_pts, \
            'Reached max buffer length for point generator'

    # Lane-dense padded temporal extent (multiple of 128) shared by all levels.
    t_pad = max(128, ((max(feat_lens) + 127) // 128) * 128)

    # Per-level scalars live in SMEM: [stride, reg_lo, reg_hi].
    params = jnp.asarray(
        [[float(s), float(r[0]), float(r[1])]
         for s, r in zip(fpn_strides, regression_range)],
        dtype=jnp.float32)

    out = pl.pallas_call(
        functools.partial(_point_gen_kernel, use_offset=use_offset),
        out_shape=jax.ShapeDtypeStruct((fpn_levels, 4, t_pad), jnp.float32),
        grid=(fpn_levels,),
        in_specs=[pl.BlockSpec(memory_space=pltpu.SMEM)],      # per-level scalars
        out_specs=pl.BlockSpec((1, 4, t_pad), lambda l: (l, 0, 0)),
        compiler_params=pltpu.CompilerParams(
            dimension_semantics=("parallel",)),   # >=2 grid steps -> both v7x TCs
    )(params)

    # Slice each level to its feature length and transpose back to the PyTorch
    # (num_points, 4) layout.  Static shapes -> plain XLA slices/transposes.
    pts_list = [
        jnp.transpose(out[l, :, :feat_lens[l]], (1, 0))
        for l in range(fpn_levels)
    ]
    return pts_list


class PointGenerator:
    """Mirror of the PyTorch module: temporal point generator for FPN levels."""

    def __init__(self, max_seq_len, fpn_strides, regression_range,
                 use_offset=False):
        assert len(regression_range) == len(fpn_strides)
        self.max_seq_len = max_seq_len
        self.fpn_levels = len(fpn_strides)
        self.fpn_strides = fpn_strides
        self.regression_range = regression_range
        self.use_offset = use_offset

    def __call__(self, feats):
        assert len(feats) == self.fpn_levels
        return point_generator_forward(
            feats, self.fpn_strides, self.regression_range,
            self.max_seq_len, self.use_offset)


if __name__ == "__main__":
    key = jax.random.PRNGKey(0)

    # Small FPN pyramid, channel-first like the PyTorch NLQ head: (B, C, T_l)
    B, C = 2, 4
    max_seq_len = 64
    fpn_strides = [1, 2, 4, 8]
    regression_range = [(0.0, 4.0), (4.0, 8.0), (8.0, 16.0), (16.0, 10000.0)]
    feat_lens = [64, 32, 16, 8]

    keys = jax.random.split(key, len(feat_lens))
    feats = [jax.random.normal(k, (B, C, t), dtype=jnp.float32)
             for k, t in zip(keys, feat_lens)]

    def reference(use_offset):
        refs = []
        for stride, rng, feat_len in zip(fpn_strides, regression_range, feat_lens):
            t = jnp.arange(0, max_seq_len, stride, dtype=jnp.float32)[:feat_len]
            if use_offset:
                t = t + 0.5 * stride
            refs.append(jnp.stack(
                [t,
                 jnp.full((feat_len,), rng[0], jnp.float32),
                 jnp.full((feat_len,), rng[1], jnp.float32),
                 jnp.full((feat_len,), float(stride), jnp.float32)],
                axis=1))
        return refs

    for use_offset in (False, True):
        module = PointGenerator(max_seq_len, fpn_strides, regression_range,
                                use_offset=use_offset)
        pts_list = module(feats)
        pts_list = jax.block_until_ready(pts_list)
        refs = reference(use_offset)
        for feat_len, pts, ref in zip(feat_lens, pts_list, refs):
            assert pts.shape == (feat_len, 4) and pts.dtype == jnp.float32
            assert jnp.allclose(pts, ref, atol=1e-6, rtol=1e-6)

    print("KERNEL_OK")
</pallas_src>

<mosaic_0001>
module attributes {stable_mosaic.version = 11 : i64} {
  func.func @_point_gen_kernel(%arg0: i32, %arg1: memref<4x3xf32, #tpu.memory_space<smem>>, %arg2: memref<1x4x128xf32, #tpu.memory_space<vmem>>) attributes {dimension_semantics = [#tpu.dimension_semantics<parallel>], iteration_bounds = array<i64: 4>, scalar_prefetch = 0 : i64, scratch_operands = 0 : i64, tpu.core_type = #tpu.core_type<tc>, window_params = [{transform_indices = @transform_0, window_bounds = array<i64: 4, 3>}, {transform_indices = @transform_1, window_bounds = array<i64: 1, 4, 128>}]} {
    %0 = arith.index_cast %arg0 : i32 to index
    %c0 = arith.constant 0 : index
    %1 = memref.load %arg1[%0, %c0] : memref<4x3xf32, #tpu.memory_space<smem>>
    %2 = arith.index_cast %arg0 : i32 to index
    %c1 = arith.constant 1 : index
    %3 = memref.load %arg1[%2, %c1] : memref<4x3xf32, #tpu.memory_space<smem>>
    %4 = arith.index_cast %arg0 : i32 to index
    %c2 = arith.constant 2 : index
    %5 = memref.load %arg1[%4, %c2] : memref<4x3xf32, #tpu.memory_space<smem>>
    %6 = tpu.iota {dimensions = array<i32: 1>} : vector<1x4x128xi32>
    %7 = tpu.iota {dimensions = array<i32: 2>} : vector<1x4x128xi32>
    %8 = arith.sitofp %7 : vector<1x4x128xi32> to vector<1x4x128xf32>
    %9 = vector.broadcast %1 : f32 to vector<1x4x128xf32>
    %10 = arith.mulf %8, %9 : vector<1x4x128xf32>
    %c0_i32 = arith.constant 0 : i32
    %11 = vector.broadcast %c0_i32 : i32 to vector<1x4x128xi32>
    %12 = arith.cmpi eq, %6, %11 : vector<1x4x128xi32>
    %c1_i32 = arith.constant 1 : i32
    %13 = vector.broadcast %c1_i32 : i32 to vector<1x4x128xi32>
    %14 = arith.cmpi eq, %6, %13 : vector<1x4x128xi32>
    %c2_i32 = arith.constant 2 : i32
    %15 = vector.broadcast %c2_i32 : i32 to vector<1x4x128xi32>
    %16 = arith.cmpi eq, %6, %15 : vector<1x4x128xi32>
    %17 = vector.broadcast %5 : f32 to vector<1x4x128xf32>
    %18 = vector.broadcast %1 : f32 to vector<1x4x128xf32>
    %19 = arith.select %16, %17, %18 : vector<1x4x128xi1>, vector<1x4x128xf32>
    %20 = vector.broadcast %3 : f32 to vector<1x4x128xf32>
    %21 = arith.select %14, %20, %19 : vector<1x4x128xi1>, vector<1x4x128xf32>
    %22 = arith.select %12, %10, %21 : vector<1x4x128xi1>, vector<1x4x128xf32>
    %c0_0 = arith.constant 0 : index
    %c0_1 = arith.constant 0 : index
    %c0_2 = arith.constant 0 : index
    %23 = vector.load %arg2[%c0_0, %c0_1, %c0_2] : memref<1x4x128xf32, #tpu.memory_space<vmem>>, vector<1x4x128xf32>
    tpu.vector_store %arg2[%c0_0, %c0_1, %c0_2], %22 {strides = array<i32>} : memref<1x4x128xf32, #tpu.memory_space<vmem>>, vector<1x4x128xf32>,
    return
  }
  func.func @transform_0(%arg0: i32) -> (i32, i32) {
    %c0_i32 = arith.constant 0 : i32
    %c0_i32_0 = arith.constant 0 : i32
    %c0_i32_1 = arith.constant 0 : i32
    return %c0_i32, %c0_i32_0 : i32, i32
  }
  func.func @transform_1(%arg0: i32) -> (i32, i32, i32) {
    %c0_i32 = arith.constant 0 : i32
    %c0_i32_0 = arith.constant 0 : i32
    %c0_i32_1 = arith.constant 0 : i32
    return %arg0, %c0_i32, %c0_i32_0 : i32, i32, i32
  }
}

</mosaic_0001>

<llo_original>
// kernel: tpu_custom_call.1
$region0: #{tpu_custom_call.1}
  #allocation0 [shape = 'u32[]', space=smem, size = 0x4, offset = 0x4, fixed_abs, tag = 'smem constant byte address 0x4 - core index']
  #allocation1 [shape = 'u32[72,128]{1,0:T(1,128)}', space=vmem, size = 0x9000, scoped, tag = 'internal scratch']
  %s0 = inlined_call_operand.hbm [shape: f32[4,3], index: 0, kind: input, shape index: {}]
  %s1 = inlined_call_operand.hbm [shape: f32[4,4,128], index: 1, kind: output, shape index: {}]
  %s2 = sld [smem:[#allocation0]]
  $region41: #{tpu_custom_call.1} parent=0
    _
  %s4 = ssub.s32 1, %s2
  %s5 = scalar_select 0, %s4, %s2
  $region1: #{tpu_custom_call.1} parent=0
    #allocation2 [shape = 'u8[2048]{0}', space=smem, size = 0x800, scoped, tag = 'input window, operand 0, single buffered']
    #allocation3 [shape = 's32[2]{0}', space=sflag, size = 0x8, scoped, tag = 'scoped memory for tpu_custom_call.1']
    #allocation4 [shape = 's32[2]{0}', space=sflag, size = 0x8, scoped, tag = 'scoped memory for tpu_custom_call.1']
    #allocation5 [shape = 'u8[4096]{0}', space=vmem, size = 0x1000, scoped, tag = 'output window, operand 0']
    %6 = vsyncpa [#allocation4], 0
    %7 = vsyncpa [#allocation3], 0
    %s8 = scalar_lea.sflag [#allocation3], 1
    %9 = vsyncpa %s8, 0
    loop: start=0, step=1, limit=6
    $region2: #{tpu_custom_call.1} parent=1 // loop_pre_header
      _
    $region3: #{tpu_custom_call.1} parent=1 // loop_header
      %s11 = sphi 0, %s15
      %p12 = scmp.ge.s32.totalorder %s11, 6
      %s19 = sphi 0, %s19
      %s21 = sphi 0, %s19
      %s22 = sphi 0, %s21
      %s36 = sphi 0, %s22
      %s42 = sphi 0, %s44
      %s45 = sphi 0, %s42
      %s46 = sphi 0, %s45
      %s62 = sphi 0, %s46
    $region4: #{tpu_custom_call.1} parent=1 // loop_header_branch
      %14 = sbr.rel (%p12) target = $region8
    $region5: #{tpu_custom_call.1} parent=1 // loop_body
      %s16 = ssub.s32 %s11, 1
      %s17 = ssub.s32 %s11, 2
      %s18 = sadd.s32 %s11, 1
      %s20 = sadd.s32 %s19, 1
      %p23 = scmp.eq.s32.totalorder %s11, 3
      %p24 = scmp.ne.s32.totalorder %s19, %s21
      %p25 = scmp.eq.s32.totalorder %s11, 0
      %p26 = por %p24, %p25
      %p27 = scmp.ne.s32.totalorder %s19, %s21
      %p28 = scmp.eq.s32.totalorder %s16, 3
      %p29 = por %p27, %p28
      %p30 = scmp.ne.s32.totalorder %s21, %s22
      %p31 = scmp.eq.s32.totalorder %s16, 0
      %p32 = por %p30, %p31
      %p33 = scmp.ne.s32.totalorder %s21, %s22
      %p34 = scmp.eq.s32.totalorder %s17, 3
      %p35 = por %p33, %p34
      %p37 = scmp.ne.s32.totalorder %s22, %s36
      %p38 = scmp.eq.s32.totalorder %s17, 0
      %p39 = por %p37, %p38
      %s40 = ssub.s32 %s11, %s18
      %p41 = scmp.eq.s32.totalorder %s40, 0
      %s43 = sadd.s32 %s42, 1
      %s44 = scalar_select %p41, %s42, %s43
      %p47 = pneg %p41
      %p48 = scmp.eq.s32.totalorder %s11, 3
      %p49 = por %p47, %p48
      %p50 = scmp.ne.s32.totalorder %s42, %s45
      %p51 = scmp.eq.s32.totalorder %s11, 0
      %p52 = por %p50, %p51
      %p53 = scmp.ne.s32.totalorder %s42, %s45
      %p54 = scmp.eq.s32.totalorder %s16, 3
      %p55 = por %p53, %p54
      %p56 = scmp.ne.s32.totalorder %s45, %s46
      %p57 = scmp.eq.s32.totalorder %s16, 0
      %p58 = por %p56, %p57
      %p59 = scmp.ne.s32.totalorder %s45, %s46
      %p60 = scmp.eq.s32.totalorder %s17, 3
      %p61 = por %p59, %p60
      %p63 = scmp.ne.s32.totalorder %s46, %s62
      %p64 = scmp.eq.s32.totalorder %s17, 0
      %p65 = por %p63, %p64
      %p66 = scmp.le.s32.totalorder 1, %s11
      %p67 = scmp.lt.s32.totalorder %s11, 5
      %p68 = pnand %p66, %p67
      %p69 = pneg %p68
      // Predicated region
      $region9: #{tpu_custom_call.1} parent=5 // pred_check
        _
      $region10: #{tpu_custom_call.1} parent=5 // pred_check_branch
        %71 = sbr.rel (%p68) target = $region12
      $region11: #{tpu_custom_call.1} parent=5 // pred_region
        %s72 = ssub.s32 %s11, 1
        // Predicated region
        $region13: #{tpu_custom_call.1} parent=11 // pred_check
          %p73 = pneg %p32
        $region14: #{tpu_custom_call.1} parent=11 // pred_check_branch
          %75 = sbr.rel (%p73) target = $region16
        $region15: #{tpu_custom_call.1} parent=11 // pred_region
          %77 = vsyncadd [#allocation4], 0
          %s79 = sshll.u32 %s0, 4
          %s80 = int_to_ptr.hbm [resolvable:$true] %s79
          %82 = dma.hbm_to_smem %s80, 64, [#allocation2], [#allocation4]
        $region16: #{tpu_custom_call.1} parent=11 // pred_fallthru
          _
      $region12: #{tpu_custom_call.1} parent=5 // pred_fallthru
        _
      %p83 = scmp.lt.s32.totalorder %s11, 4
      // Predicated region
      $region17: #{tpu_custom_call.1} parent=5 // pred_check
        %p84 = pneg %p83
      $region18: #{tpu_custom_call.1} parent=5 // pred_check_branch
        %86 = sbr.rel (%p84) target = $region20
      $region19: #{tpu_custom_call.1} parent=5 // pred_region
        _
      $region20: #{tpu_custom_call.1} parent=5 // pred_fallthru
        _
      %p87 = scmp.le.s32.totalorder 1, %s11
      %p88 = scmp.lt.s32.totalorder %s11, 5
      %p89 = pnand %p87, %p88
      %p90 = pneg %p89
      // Predicated region
      $region21: #{tpu_custom_call.1} parent=5 // pred_check
        _
      $region22: #{tpu_custom_call.1} parent=5 // pred_check_branch
        %92 = sbr.rel (%p89) target = $region24
      $region23: #{tpu_custom_call.1} parent=5 // pred_region
        %s93 = ssub.s32 %s11, 1
        // Predicated region
        $region25: #{tpu_custom_call.1} parent=23 // pred_check
          %p94 = pneg %p32
        $region26: #{tpu_custom_call.1} parent=23 // pred_check_branch
          %96 = sbr.rel (%p94) target = $region28
        $region27: #{tpu_custom_call.1} parent=23 // pred_region
          %98 = dma.done [#allocation4], 64
        $region28: #{tpu_custom_call.1} parent=23 // pred_fallthru
          _
        %99 = sfence
        %p100 = pneg %p32
        %p101 = pneg %p29
        %p102 = pneg %p58
        %p103 = pneg %p55
        %s104 = sand.u32 %s45, 1
        %s105 = scalar_lea.sflag [#allocation3], %s104
        %s106 = sand.u32 %s45, 1
        %s107 = smul.addr %s106, 4
        %s108 = scalar_lea.vmem [#allocation5], %s107
        %s109 = smul.u32 %s16, 128
        %s110 = sld [smem:[#allocation2 + %s109]]
        %s111 = sadd.s32 %s109, 1
        %s112 = sld [smem:[#allocation2 + %s111]]
        %s113 = sadd.s32 %s109, 2
        %s114 = sld [smem:[#allocation2 + %s113]]
        %v115 = vlaneseq
        %v116 = vshrl.u32 %v115, 7
        %v117 = vlaneseq
        %v118 = vand.u32 %v117, 127
        %v119 = vcvt.s32.f32 %v118
        %v120 = vstv %s110
        %v121 = vmul.f32 %v119, %v120
        %vm122 = vcmp.eq.s32.totalorder %v116, 0
        %vm123 = vcmp.eq.s32.totalorder %v116, 1
        %vm124 = vcmp.eq.s32.totalorder %v116, 2
        %v125 = vstv %s114
        %v126 = vsel %vm124, %v125, %v120
        %v127 = vstv %s112
        %v128 = vsel %vm123, %v127, %v126
        %v129 = vsel %vm122, %v121, %v128
        %130 = vst [vmem:[%s108] sm:$0xf] %v129
        %s131 = sand.u32 %s45, 1
        %s132 = scalar_lea.sflag [#allocation3], %s131
        %s133 = sand.u32 %s45, 1
        %s134 = smul.addr %s133, 4
        %s135 = scalar_lea.vmem [#allocation5], %s134
        // Predicated region
        $region29: #{tpu_custom_call.1} parent=23 // pred_check
          %p136 = pneg %p55
        $region30: #{tpu_custom_call.1} parent=23 // pred_check_branch
          %138 = sbr.rel (%p136) target = $region32
        $region31: #{tpu_custom_call.1} parent=23 // pred_region
          %140 = vsyncadd %s132, 0
          %s141 = smul.addr %s16, 4
          %s142 = scalar_lea.hbm %s1, %s141
          %s144 = sshll.u32 %s135, 4
          %s145 = int_to_ptr.vmem [resolvable:$true] %s144
          %s146 = sshll.u32 %s142, 4
          %s147 = int_to_ptr.hbm [resolvable:$true] %s146
          %149 = dma.vmem_to_hbm [thread:$0]  %s145, 64, %s147, %s132
        $region32: #{tpu_custom_call.1} parent=23 // pred_fallthru
          _
      $region24: #{tpu_custom_call.1} parent=5 // pred_fallthru
        _
      %p150 = scmp.le.s32.totalorder 2, %s11
      // Predicated region
      $region33: #{tpu_custom_call.1} parent=5 // pred_check
        %p151 = pneg %p150
      $region34: #{tpu_custom_call.1} parent=5 // pred_check_branch
        %153 = sbr.rel (%p151) target = $region36
      $region35: #{tpu_custom_call.1} parent=5 // pred_region
        %s154 = ssub.s32 %s11, 2
        // Predicated region
        $region37: #{tpu_custom_call.1} parent=35 // pred_check
          %p155 = pneg %p61
        $region38: #{tpu_custom_call.1} parent=35 // pred_check_branch
          %157 = sbr.rel (%p155) target = $region40
        $region39: #{tpu_custom_call.1} parent=35 // pred_region
          %s158 = sand.u32 %s46, 1
          %s159 = scalar_lea.sflag [#allocation3], %s158
          %s160 = sand.u32 %s46, 1
          %s161 = smul.addr %s160, 4
          %s162 = scalar_lea.vmem [#allocation5], %s161
          %164 = dma.done %s159, 64
        $region40: #{tpu_custom_call.1} parent=35 // pred_fallthru
          _
      $region36: #{tpu_custom_call.1} parent=5 // pred_fallthru
        _
    $region6: #{tpu_custom_call.1} parent=1 // loop_footer
      %s15 = sadd.s32 1, %s11
    $region7: #{tpu_custom_call.1} parent=1 // loop_footer_branch
      %10 = sbr.rel target = $region3
    $region8: #{tpu_custom_call.1} parent=1 // loop_exit
      _
    %165 = vsyncpa [#allocation3], 1
    %s166 = scalar_lea.sflag [#allocation3], 1
    %167 = vsyncpa %s166, 1
    %168 = vsyncpa [#allocation4], 1
    %s169 = scalar_lea.sflag [#allocation4], 1
    %170 = vsyncpa %s169, 1

</llo_original>
